<compile_context>
chip_gen: v5e
topology: v5e:2x2
jax: 0.10.0
libtpu: 0.0.40
codegen_flags: <defaults>
</compile_context>

<pallas_src>
import functools

import jax
import jax.numpy as jnp
from jax import lax
from jax.experimental import pallas as pl
from jax.experimental.pallas import tpu as pltpu


def _a2_kernel(x_ref, wproj_ref, bproj_ref, wu_ref, bu_ref, o_ref, *, plane):
    """One batch image per grid step.

    x_ref    : (1, Cin, HW)      input image, channels-major, spatial lane-dense
    wproj_ref: (3*plane, Cin)    stacked [down; gather_down; distribue_down] weights
    bproj_ref: (3*plane, 1)      stacked biases (column vector)
    wu_ref   : (Cin, plane)      "up" 1x1 conv weight
    bu_ref   : (Cin, 1)          "up" bias (column vector)
    o_ref    : (1, Cin, HW)      output image
    """
    x = x_ref[0].astype(jnp.float32)                     # (Cin, HW)
    wproj = wproj_ref[...].astype(jnp.float32)           # (3c, Cin)
    bproj = bproj_ref[...].astype(jnp.float32)           # (3c, 1)

    # Fused projection: one MXU matmul yields A, B-logits, C-logits.
    proj = jnp.dot(wproj, x, preferred_element_type=jnp.float32) + bproj   # (3c, HW)
    a = proj[0:plane, :]                                  # (c, HW)
    b_log = proj[plane:2 * plane, :]                      # (c, HW)
    c_log = proj[2 * plane:3 * plane, :]                  # (c, HW)

    def softmax_lanes(v):
        # softmax over the spatial (lane) axis, numerically stabilized.
        m = jnp.max(v, axis=-1, keepdims=True)
        e = jnp.exp(v - m)
        s = jnp.sum(e, axis=-1, keepdims=True)
        return e / s

    b_sm = softmax_lanes(b_log)                           # (c, HW)
    c_sm = softmax_lanes(c_log)                           # (c, HW)

    # G^T[j, i] = sum_p Bsm[j, p] * A[i, p]   -> (c, c)
    g_t = jnp.dot(b_sm, a.T, preferred_element_type=jnp.float32)
    # atten[d, p] = sum_i G[i, d] * Csm[i, p] = (G^T @ Csm)[d, p]  -> (c, HW)
    atten = jnp.dot(g_t, c_sm, preferred_element_type=jnp.float32)

    # "up" 1x1 conv + residual.
    up = jnp.dot(wu_ref[...].astype(jnp.float32), atten,
                 preferred_element_type=jnp.float32) + bu_ref[...].astype(jnp.float32)
    o_ref[0] = (x + up).astype(o_ref.dtype)               # (Cin, HW), lane-dense store


def a2_block(x_nchw, wd, bd, wg, bg, wc, bc, wu, bu):
    """A2Block forward. Input/output are NCHW (PyTorch convention).

    wd, wg, wc : (plane, inplane, 1, 1) weights of down / gather_down / distribue_down
    bd, bg, bc : (plane,) biases
    wu         : (inplane, plane, 1, 1) weight of up
    bu         : (inplane,) bias
    """
    N, Cin, H, W = x_nchw.shape
    plane = wd.shape[0]
    HW = H * W

    x_flat = x_nchw.reshape(N, Cin, HW)                   # NCHW-native, no transpose

    # Fuse the three "down" 1x1 convs into one stacked weight / bias.
    wproj = jnp.concatenate(
        [wd[:, :, 0, 0], wg[:, :, 0, 0], wc[:, :, 0, 0]], axis=0)   # (3c, Cin)
    bproj = jnp.concatenate([bd, bg, bc], axis=0).reshape(3 * plane, 1)
    wu2 = wu[:, :, 0, 0]                                   # (Cin, plane)
    bu2 = bu.reshape(Cin, 1)

    kernel = functools.partial(_a2_kernel, plane=plane)

    out_flat = pl.pallas_call(
        kernel,
        out_shape=jax.ShapeDtypeStruct((N, Cin, HW), x_nchw.dtype),
        grid=(N,),
        in_specs=[
            pl.BlockSpec((1, Cin, HW), lambda n: (n, 0, 0)),
            pl.BlockSpec((3 * plane, Cin), lambda n: (0, 0)),
            pl.BlockSpec((3 * plane, 1), lambda n: (0, 0)),
            pl.BlockSpec((Cin, plane), lambda n: (0, 0)),
            pl.BlockSpec((Cin, 1), lambda n: (0, 0)),
        ],
        out_specs=pl.BlockSpec((1, Cin, HW), lambda n: (n, 0, 0)),
        compiler_params=pltpu.CompilerParams(dimension_semantics=("parallel",)),
    )(x_flat, wproj, bproj, wu2, bu2)

    return out_flat.reshape(N, Cin, H, W)


def _reference(x, wd, bd, wg, bg, wc, bc, wu, bu):
    """Pure-JAX reference mirroring the PyTorch A2Block.forward (NCHW)."""
    N, Cin, H, W = x.shape
    xf = x.reshape(N, Cin, H * W)
    A = jnp.einsum('ok,nkp->nop', wd[:, :, 0, 0], xf) + bd[None, :, None]
    B = jnp.einsum('ok,nkp->nop', wg[:, :, 0, 0], xf) + bg[None, :, None]
    B = jax.nn.softmax(B, axis=-1)
    G = jnp.einsum('ncp,ndp->ncd', A, B)                   # bmm(A, B^T)
    C = jnp.einsum('ok,nkp->nop', wc[:, :, 0, 0], xf) + bc[None, :, None]
    C = jax.nn.softmax(C, axis=-1)
    atten = jnp.einsum('ncd,ncp->ndp', G, C)               # bmm(C^T, G) permuted back
    up = jnp.einsum('oj,njp->nop', wu[:, :, 0, 0], atten) + bu[None, :, None]
    return (xf + up).reshape(N, Cin, H, W)


if __name__ == "__main__":
    key = jax.random.PRNGKey(0)
    ks = jax.random.split(key, 9)

    N, Cin, plane, H, W = 2, 16, 8, 16, 16

    x = jax.random.normal(ks[0], (N, Cin, H, W), jnp.float32)
    wd = jax.random.normal(ks[1], (plane, Cin, 1, 1), jnp.float32) * 0.1
    bd = jax.random.normal(ks[2], (plane,), jnp.float32) * 0.1
    wg = jax.random.normal(ks[3], (plane, Cin, 1, 1), jnp.float32) * 0.1
    bg = jax.random.normal(ks[4], (plane,), jnp.float32) * 0.1
    wc = jax.random.normal(ks[5], (plane, Cin, 1, 1), jnp.float32) * 0.1
    bc = jax.random.normal(ks[6], (plane,), jnp.float32) * 0.1
    wu = jax.random.normal(ks[7], (Cin, plane, 1, 1), jnp.float32) * 0.1
    bu = jax.random.normal(ks[8], (Cin,), jnp.float32) * 0.1

    out = a2_block(x, wd, bd, wg, bg, wc, bc, wu, bu)
    out = jax.block_until_ready(out)

    ref = _reference(x, wd, bd, wg, bg, wc, bc, wu, bu)
    ref = jax.block_until_ready(ref)

    assert out.shape == (N, Cin, H, W), out.shape
    assert jnp.allclose(out, ref, atol=1e-4, rtol=1e-4), float(jnp.max(jnp.abs(out - ref)))
    print("KERNEL_OK")
</pallas_src>

<mosaic_0001>
module attributes {stable_mosaic.version = 11 : i64} {
  func.func @_a2_kernel(%arg0: i32, %arg1: memref<1x16x256xf32, #tpu.memory_space<vmem>>, %arg2: memref<24x16xf32, #tpu.memory_space<vmem>>, %arg3: memref<24x1xf32, #tpu.memory_space<vmem>>, %arg4: memref<16x8xf32, #tpu.memory_space<vmem>>, %arg5: memref<16x1xf32, #tpu.memory_space<vmem>>, %arg6: memref<1x16x256xf32, #tpu.memory_space<vmem>>) attributes {dimension_semantics = [#tpu.dimension_semantics<parallel>], iteration_bounds = array<i64: 2>, scalar_prefetch = 0 : i64, scratch_operands = 0 : i64, tpu.core_type = #tpu.core_type<tc>, window_params = [{transform_indices = @transform_0, window_bounds = array<i64: 1, 16, 256>}, {pipeline_mode = #tpu.pipeline_mode<synchronous>, transform_indices = @transform_1, window_bounds = array<i64: 24, 16>}, {pipeline_mode = #tpu.pipeline_mode<synchronous>, transform_indices = @transform_2, window_bounds = array<i64: 24, 1>}, {pipeline_mode = #tpu.pipeline_mode<synchronous>, transform_indices = @transform_3, window_bounds = array<i64: 16, 8>}, {pipeline_mode = #tpu.pipeline_mode<synchronous>, transform_indices = @transform_4, window_bounds = array<i64: 16, 1>}, {transform_indices = @transform_5, window_bounds = array<i64: 1, 16, 256>}]} {
    %c0 = arith.constant 0 : index
    %c0_0 = arith.constant 0 : index
    %c0_1 = arith.constant 0 : index
    %0 = vector.load %arg1[%c0, %c0_0, %c0_1] : memref<1x16x256xf32, #tpu.memory_space<vmem>>, vector<1x16x256xf32>
    %1 = vector.shape_cast %0 : vector<1x16x256xf32> to vector<16x256xf32>
    %c0_2 = arith.constant 0 : index
    %c0_3 = arith.constant 0 : index
    %2 = vector.load %arg2[%c0_2, %c0_3] : memref<24x16xf32, #tpu.memory_space<vmem>>, vector<24x16xf32>
    %c0_4 = arith.constant 0 : index
    %c0_5 = arith.constant 0 : index
    %3 = vector.load %arg3[%c0_4, %c0_5] : memref<24x1xf32, #tpu.memory_space<vmem>>, vector<24x1xf32>
    %cst = arith.constant dense<0.000000e+00> : vector<24x256xf32>
    %4 = tpu.matmul %2, %1, %cst {dimension_numbers = #tpu.dot_dimension_numbers<[1], [0], [0], [1], [0, 0, 1, 1], [], []>} : vector<24x16xf32>, vector<16x256xf32>, vector<24x256xf32> -> vector<24x256xf32>
    %5 = vector.broadcast %3 : vector<24x1xf32> to vector<24x256xf32>
    %6 = arith.addf %4, %5 : vector<24x256xf32>
    %7 = vector.extract_strided_slice %6 {offsets = [0, 0], sizes = [8, 256], strides = [1, 1]} : vector<24x256xf32> to vector<8x256xf32>
    %8 = vector.extract_strided_slice %6 {offsets = [8, 0], sizes = [8, 256], strides = [1, 1]} : vector<24x256xf32> to vector<8x256xf32>
    %9 = vector.extract_strided_slice %6 {offsets = [16, 0], sizes = [8, 256], strides = [1, 1]} : vector<24x256xf32> to vector<8x256xf32>
    %cst_6 = arith.constant dense<0xFF800000> : vector<8xf32>
    %10 = vector.multi_reduction <maximumf>, %8, %cst_6 [1] : vector<8x256xf32> to vector<8xf32>
    %11 = vector.shape_cast %10 : vector<8xf32> to vector<8x1xf32>
    %12 = vector.broadcast %11 : vector<8x1xf32> to vector<8x256xf32>
    %13 = arith.subf %8, %12 : vector<8x256xf32>
    %14 = math.exp %13 : vector<8x256xf32>
    %cst_7 = arith.constant dense<0.000000e+00> : vector<8xf32>
    %15 = vector.multi_reduction <add>, %14, %cst_7 [1] : vector<8x256xf32> to vector<8xf32>
    %16 = vector.shape_cast %15 : vector<8xf32> to vector<8x1xf32>
    %17 = vector.broadcast %16 : vector<8x1xf32> to vector<8x256xf32>
    %18 = arith.divf %14, %17 : vector<8x256xf32>
    %cst_8 = arith.constant dense<0xFF800000> : vector<8xf32>
    %19 = vector.multi_reduction <maximumf>, %9, %cst_8 [1] : vector<8x256xf32> to vector<8xf32>
    %20 = vector.shape_cast %19 : vector<8xf32> to vector<8x1xf32>
    %21 = vector.broadcast %20 : vector<8x1xf32> to vector<8x256xf32>
    %22 = arith.subf %9, %21 : vector<8x256xf32>
    %23 = math.exp %22 : vector<8x256xf32>
    %cst_9 = arith.constant dense<0.000000e+00> : vector<8xf32>
    %24 = vector.multi_reduction <add>, %23, %cst_9 [1] : vector<8x256xf32> to vector<8xf32>
    %25 = vector.shape_cast %24 : vector<8xf32> to vector<8x1xf32>
    %26 = vector.broadcast %25 : vector<8x1xf32> to vector<8x256xf32>
    %27 = arith.divf %23, %26 : vector<8x256xf32>
    %28 = tpu.transpose %7, [1, 0] : vector<8x256xf32> -> vector<256x8xf32>
    %cst_10 = arith.constant dense<0.000000e+00> : vector<8x8xf32>
    %29 = tpu.matmul %18, %28, %cst_10 {dimension_numbers = #tpu.dot_dimension_numbers<[1], [0], [0], [1], [0, 0, 1, 1], [], []>} : vector<8x256xf32>, vector<256x8xf32>, vector<8x8xf32> -> vector<8x8xf32>
    %cst_11 = arith.constant dense<0.000000e+00> : vector<8x256xf32>
    %30 = tpu.matmul %29, %27, %cst_11 {dimension_numbers = #tpu.dot_dimension_numbers<[1], [0], [0], [1], [0, 0, 1, 1], [], []>} : vector<8x8xf32>, vector<8x256xf32>, vector<8x256xf32> -> vector<8x256xf32>
    %c0_12 = arith.constant 0 : index
    %c0_13 = arith.constant 0 : index
    %31 = vector.load %arg4[%c0_12, %c0_13] : memref<16x8xf32, #tpu.memory_space<vmem>>, vector<16x8xf32>
    %cst_14 = arith.constant dense<0.000000e+00> : vector<16x256xf32>
    %32 = tpu.matmul %31, %30, %cst_14 {dimension_numbers = #tpu.dot_dimension_numbers<[1], [0], [0], [1], [0, 0, 1, 1], [], []>} : vector<16x8xf32>, vector<8x256xf32>, vector<16x256xf32> -> vector<16x256xf32>
    %c0_15 = arith.constant 0 : index
    %c0_16 = arith.constant 0 : index
    %33 = vector.load %arg5[%c0_15, %c0_16] : memref<16x1xf32, #tpu.memory_space<vmem>>, vector<16x1xf32>
    %34 = vector.broadcast %33 : vector<16x1xf32> to vector<16x256xf32>
    %35 = arith.addf %32, %34 : vector<16x256xf32>
    %36 = arith.addf %1, %35 : vector<16x256xf32>
    %c0_17 = arith.constant 0 : index
    %c0_18 = arith.constant 0 : index
    %c0_19 = arith.constant 0 : index
    %37 = vector.load %arg6[%c0_17, %c0_18, %c0_19] : memref<1x16x256xf32, #tpu.memory_space<vmem>>, vector<1x16x256xf32>
    %38 = vector.shape_cast %37 : vector<1x16x256xf32> to vector<16x256xf32>
    %39 = vector.shape_cast %36 : vector<16x256xf32> to vector<1x16x256xf32>
    tpu.vector_store %arg6[%c0_17, %c0_18, %c0_19], %39 {strides = array<i32>} : memref<1x16x256xf32, #tpu.memory_space<vmem>>, vector<1x16x256xf32>,
    return
  }
  func.func @transform_0(%arg0: i32) -> (i32, i32, i32) {
    %c0_i32 = arith.constant 0 : i32
    %c0_i32_0 = arith.constant 0 : i32
    %c0_i32_1 = arith.constant 0 : i32
    return %arg0, %c0_i32, %c0_i32_0 : i32, i32, i32
  }
  func.func @transform_1(%arg0: i32) -> (i32, i32) {
    %c0_i32 = arith.constant 0 : i32
    %c0_i32_0 = arith.constant 0 : i32
    %c0_i32_1 = arith.constant 0 : i32
    return %c0_i32, %c0_i32_0 : i32, i32
  }
  func.func @transform_2(%arg0: i32) -> (i32, i32) {
    %c0_i32 = arith.constant 0 : i32
    %c0_i32_0 = arith.constant 0 : i32
    %c0_i32_1 = arith.constant 0 : i32
    return %c0_i32, %c0_i32_0 : i32, i32
  }
  func.func @transform_3(%arg0: i32) -> (i32, i32) {
    %c0_i32 = arith.constant 0 : i32
    %c0_i32_0 = arith.constant 0 : i32
    %c0_i32_1 = arith.constant 0 : i32
    return %c0_i32, %c0_i32_0 : i32, i32
  }
  func.func @transform_4(%arg0: i32) -> (i32, i32) {
    %c0_i32 = arith.constant 0 : i32
    %c0_i32_0 = arith.constant 0 : i32
    %c0_i32_1 = arith.constant 0 : i32
    return %c0_i32, %c0_i32_0 : i32, i32
  }
  func.func @transform_5(%arg0: i32) -> (i32, i32, i32) {
    %c0_i32 = arith.constant 0 : i32
    %c0_i32_0 = arith.constant 0 : i32
    %c0_i32_1 = arith.constant 0 : i32
    return %arg0, %c0_i32, %c0_i32_0 : i32, i32, i32
  }
}

</mosaic_0001>

<llo_original>
// kernel: tpu_custom_call.1
$region0: #{tpu_custom_call.1}
  #allocation0 [shape = 'u32[]', space=smem, size = 0x4, offset = 0x4, fixed_abs, tag = 'smem constant byte address 0x4 - core index']
  #allocation1 [shape = 'u32[72,128]{1,0:T(1,128)}', space=vmem, size = 0x9000, scoped, tag = 'internal scratch']
  %s0 = inlined_call_operand.vmem [shape: f32[2,16,256], index: 0, kind: input, shape index: {}]
  %s1 = inlined_call_operand.vmem [shape: f32[24,16], index: 1, kind: input, shape index: {}]
  %s2 = inlined_call_operand.vmem [shape: f32[24,1], index: 2, kind: input, shape index: {}]
  %s3 = inlined_call_operand.vmem [shape: f32[16,8], index: 3, kind: input, shape index: {}]
  %s4 = inlined_call_operand.vmem [shape: f32[16,1], index: 4, kind: input, shape index: {}]
  %s5 = inlined_call_operand.hbm [shape: f32[2,16,256], index: 5, kind: output, shape index: {}]
  %s6 = sld [smem:[#allocation0]]
  $region53: #{tpu_custom_call.1} parent=0
    _
  %s8 = ssub.s32 1, %s6
  %s9 = scalar_select 0, %s8, %s6
  $region1: #{tpu_custom_call.1} parent=0
    #allocation2 [shape = 'u8[32768]{0}', space=vmem, size = 0x8000, scoped, tag = 'output window, operand 0']
    #allocation3 [shape = 's32[2]{0}', space=sflag, size = 0x8, scoped, tag = 'scoped memory for tpu_custom_call.1']
    %10 = vsyncpa [#allocation3], 0
    %s11 = scalar_lea.sflag [#allocation3], 1
    %12 = vsyncpa %s11, 0
    loop: start=0, step=1, limit=4
    $region2: #{tpu_custom_call.1} parent=1 // loop_pre_header
      _
    $region3: #{tpu_custom_call.1} parent=1 // loop_header
      %s14 = sphi 0, %s18
      %p15 = scmp.ge.s32.totalorder %s14, 4
      %s24 = sphi 0, %s26
      %s27 = sphi 0, %s24
      %s28 = sphi 0, %s27
      %s44 = sphi 0, %s28
      %s48 = sphi 0, %s48
      %s50 = sphi 0, %s48
      %s51 = sphi 0, %s50
      %s65 = sphi 0, %s51
      %s69 = sphi 0, %s69
      %s71 = sphi 0, %s69
      %s72 = sphi 0, %s71
      %s86 = sphi 0, %s72
      %s90 = sphi 0, %s90
      %s92 = sphi 0, %s90
      %s93 = sphi 0, %s92
      %s107 = sphi 0, %s93
      %s111 = sphi 0, %s111
      %s113 = sphi 0, %s111
      %s114 = sphi 0, %s113
      %s128 = sphi 0, %s114
      %s134 = sphi 0, %s136
      %s137 = sphi 0, %s134
      %s138 = sphi 0, %s137
      %s154 = sphi 0, %s138
    $region4: #{tpu_custom_call.1} parent=1 // loop_header_branch
      %17 = sbr.rel (%p15) target = $region8
    $region5: #{tpu_custom_call.1} parent=1 // loop_body
      %s19 = ssub.s32 %s14, 1
      %s20 = ssub.s32 %s14, 2
      %s21 = sadd.s32 %s14, 1
      %s22 = ssub.s32 %s14, %s21
      %p23 = scmp.eq.s32.totalorder %s22, 0
      %s25 = sadd.s32 %s24, 1
      %s26 = scalar_select %p23, %s24, %s25
      %p29 = pneg %p23
      %p30 = scmp.eq.s32.totalorder %s14, 1
      %p31 = por %p29, %p30
      %p32 = scmp.ne.s32.totalorder %s24, %s27
      %p33 = scmp.eq.s32.totalorder %s14, 0
      %p34 = por %p32, %p33
      %p35 = scmp.ne.s32.totalorder %s24, %s27
      %p36 = scmp.eq.s32.totalorder %s19, 1
      %p37 = por %p35, %p36
      %p38 = scmp.ne.s32.totalorder %s27, %s28
      %p39 = scmp.eq.s32.totalorder %s19, 0
      %p40 = por %p38, %p39
      %p41 = scmp.ne.s32.totalorder %s27, %s28
      %p42 = scmp.eq.s32.totalorder %s20, 1
      %p43 = por %p41, %p42
      %p45 = scmp.ne.s32.totalorder %s28, %s44
      %p46 = scmp.eq.s32.totalorder %s20, 0
      %p47 = por %p45, %p46
      %s49 = sadd.s32 %s48, 1
      %p52 = scmp.eq.s32.totalorder %s14, 1
      %p53 = scmp.ne.s32.totalorder %s48, %s50
      %p54 = scmp.eq.s32.totalorder %s14, 0
      %p55 = por %p53, %p54
      %p56 = scmp.ne.s32.totalorder %s48, %s50
      %p57 = scmp.eq.s32.totalorder %s19, 1
      %p58 = por %p56, %p57
      %p59 = scmp.ne.s32.totalorder %s50, %s51
      %p60 = scmp.eq.s32.totalorder %s19, 0
      %p61 = por %p59, %p60
      %p62 = scmp.ne.s32.totalorder %s50, %s51
      %p63 = scmp.eq.s32.totalorder %s20, 1
      %p64 = por %p62, %p63
      %p66 = scmp.ne.s32.totalorder %s51, %s65
      %p67 = scmp.eq.s32.totalorder %s20, 0
      %p68 = por %p66, %p67
      %s70 = sadd.s32 %s69, 1
      %p73 = scmp.eq.s32.totalorder %s14, 1
      %p74 = scmp.ne.s32.totalorder %s69, %s71
      %p75 = scmp.eq.s32.totalorder %s14, 0
      %p76 = por %p74, %p75
      %p77 = scmp.ne.s32.totalorder %s69, %s71
      %p78 = scmp.eq.s32.totalorder %s19, 1
      %p79 = por %p77, %p78
      %p80 = scmp.ne.s32.totalorder %s71, %s72
      %p81 = scmp.eq.s32.totalorder %s19, 0
      %p82 = por %p80, %p81
      %p83 = scmp.ne.s32.totalorder %s71, %s72
      %p84 = scmp.eq.s32.totalorder %s20, 1
      %p85 = por %p83, %p84
      %p87 = scmp.ne.s32.totalorder %s72, %s86
      %p88 = scmp.eq.s32.totalorder %s20, 0
      %p89 = por %p87, %p88
      %s91 = sadd.s32 %s90, 1
      %p94 = scmp.eq.s32.totalorder %s14, 1
      %p95 = scmp.ne.s32.totalorder %s90, %s92
      %p96 = scmp.eq.s32.totalorder %s14, 0
      %p97 = por %p95, %p96
      %p98 = scmp.ne.s32.totalorder %s90, %s92
      %p99 = scmp.eq.s32.totalorder %s19, 1
      %p100 = por %p98, %p99
      %p101 = scmp.ne.s32.totalorder %s92, %s93
      %p102 = scmp.eq.s32.totalorder %s19, 0
      %p103 = por %p101, %p102
      %p104 = scmp.ne.s32.totalorder %s92, %s93
      %p105 = scmp.eq.s32.totalorder %s20, 1
      %p106 = por %p104, %p105
      %p108 = scmp.ne.s32.totalorder %s93, %s107
      %p109 = scmp.eq.s32.totalorder %s20, 0
      %p110 = por %p108, %p109
      %s112 = sadd.s32 %s111, 1
      %p115 = scmp.eq.s32.totalorder %s14, 1
      %p116 = scmp.ne.s32.totalorder %s111, %s113
      %p117 = scmp.eq.s32.totalorder %s14, 0
      %p118 = por %p116, %p117
      %p119 = scmp.ne.s32.totalorder %s111, %s113
      %p120 = scmp.eq.s32.totalorder %s19, 1
      %p121 = por %p119, %p120
      %p122 = scmp.ne.s32.totalorder %s113, %s114
      %p123 = scmp.eq.s32.totalorder %s19, 0
      %p124 = por %p122, %p123
      %p125 = scmp.ne.s32.totalorder %s113, %s114
      %p126 = scmp.eq.s32.totalorder %s20, 1
      %p127 = por %p125, %p126
      %p129 = scmp.ne.s32.totalorder %s114, %s128
      %p130 = scmp.eq.s32.totalorder %s20, 0
      %p131 = por %p129, %p130
      %s132 = ssub.s32 %s14, %s21
      %p133 = scmp.eq.s32.totalorder %s132, 0
      %s135 = sadd.s32 %s134, 1
      %s136 = scalar_select %p133, %s134, %s135
      %p139 = pneg %p133
      %p140 = scmp.eq.s32.totalorder %s14, 1
      %p141 = por %p139, %p140
      %p142 = scmp.ne.s32.totalorder %s134, %s137
      %p143 = scmp.eq.s32.totalorder %s14, 0
      %p144 = por %p142, %p143
      %p145 = scmp.ne.s32.totalorder %s134, %s137
      %p146 = scmp.eq.s32.totalorder %s19, 1
      %p147 = por %p145, %p146
      %p148 = scmp.ne.s32.totalorder %s137, %s138
      %p149 = scmp.eq.s32.totalorder %s19, 0
      %p150 = por %p148, %p149
      %p151 = scmp.ne.s32.totalorder %s137, %s138
      %p152 = scmp.eq.s32.totalorder %s20, 1
      %p153 = por %p151, %p152
      %p155 = scmp.ne.s32.totalorder %s138, %s154
      %p156 = scmp.eq.s32.totalorder %s20, 0
      %p157 = por %p155, %p156
      %p158 = scmp.le.s32.totalorder 1, %s14
      %p159 = scmp.lt.s32.totalorder %s14, 3
      %p160 = pnand %p158, %p159
      %p161 = pneg %p160
      // Predicated region
      $region9: #{tpu_custom_call.1} parent=5 // pred_check
        _
      $region10: #{tpu_custom_call.1} parent=5 // pred_check_branch
        %163 = sbr.rel (%p160) target = $region12
      $region11: #{tpu_custom_call.1} parent=5 // pred_region
        %s164 = ssub.s32 %s14, 1
        // Predicated region
        $region13: #{tpu_custom_call.1} parent=11 // pred_check
          %p165 = pneg %p61
        $region14: #{tpu_custom_call.1} parent=11 // pred_check_branch
          %167 = sbr.rel (%p165) target = $region16
        $region15: #{tpu_custom_call.1} parent=11 // pred_region
          _
        $region16: #{tpu_custom_call.1} parent=11 // pred_fallthru
          _
        // Predicated region
        $region17: #{tpu_custom_call.1} parent=11 // pred_check
          %p168 = pneg %p82
        $region18: #{tpu_custom_call.1} parent=11 // pred_check_branch
          %170 = sbr.rel (%p168) target = $region20
        $region19: #{tpu_custom_call.1} parent=11 // pred_region
          _
        $region20: #{tpu_custom_call.1} parent=11 // pred_fallthru
          _
        // Predicated region
        $region21: #{tpu_custom_call.1} parent=11 // pred_check
          %p171 = pneg %p103
        $region22: #{tpu_custom_call.1} parent=11 // pred_check_branch
          %173 = sbr.rel (%p171) target = $region24
        $region23: #{tpu_custom_call.1} parent=11 // pred_region
          _
        $region24: #{tpu_custom_call.1} parent=11 // pred_fallthru
          _
        // Predicated region
        $region25: #{tpu_custom_call.1} parent=11 // pred_check
          %p174 = pneg %p124
        $region26: #{tpu_custom_call.1} parent=11 // pred_check_branch
          %176 = sbr.rel (%p174) target = $region28
        $region27: #{tpu_custom_call.1} parent=11 // pred_region
          _
        $region28: #{tpu_custom_call.1} parent=11 // pred_fallthru
          _
      $region12: #{tpu_custom_call.1} parent=5 // pred_fallthru
        _
      %p177 = scmp.lt.s32.totalorder %s14, 2
      // Predicated region
      $region29: #{tpu_custom_call.1} parent=5 // pred_check
        %p178 = pneg %p177
      $region30: #{tpu_custom_call.1} parent=5 // pred_check_branch
        %180 = sbr.rel (%p178) target = $region32
      $region31: #{tpu_custom_call.1} parent=5 // pred_region
        // Predicated region
        $region33: #{tpu_custom_call.1} parent=31 // pred_check
          %p181 = pneg %p34
        $region34: #{tpu_custom_call.1} parent=31 // pred_check_branch
          %183 = sbr.rel (%p181) target = $region36
        $region35: #{tpu_custom_call.1} parent=31 // pred_region
          %p184 = scmp.lt.s32.totalorder %s14, 1
          %s185 = scalar_select %p184, %s14, 1
          %s186 = smul.addr %s185, 4
          %s187 = smul.addr %s186, 8
          %s188 = scalar_lea.vmem %s0, %s187
        $region36: #{tpu_custom_call.1} parent=31 // pred_fallthru
          _
      $region32: #{tpu_custom_call.1} parent=5 // pred_fallthru
        _
      %p189 = scmp.le.s32.totalorder 1, %s14
      %p190 = scmp.lt.s32.totalorder %s14, 3
      %p191 = pnand %p189, %p190
      %p192 = pneg %p191
      // Predicated region
      $region37: #{tpu_custom_call.1} parent=5 // pred_check
        _
      $region38: #{tpu_custom_call.1} parent=5 // pred_check_branch
        %194 = sbr.rel (%p191) target = $region40
      $region39: #{tpu_custom_call.1} parent=5 // pred_region
        %s195 = ssub.s32 %s14, 1
        %p196 = scmp.lt.s32.totalorder %s19, 1
        %s197 = scalar_select %p196, %s19, 1
        %s198 = smul.addr %s197, 4
        %s199 = smul.addr %s198, 8
        %s200 = scalar_lea.vmem %s0, %s199
        %p201 = pneg %p40
        %p202 = pneg %p37
        %p203 = pneg %p61
        %p204 = pneg %p58
        %p205 = pneg %p82
        %p206 = pneg %p79
        %p207 = pneg %p103
        %p208 = pneg %p100
        %p209 = pneg %p124
        %p210 = pneg %p121
        %p211 = pneg %p150
        %p212 = pneg %p147
        %s213 = sand.u32 %s137, 1
        %s214 = scalar_lea.sflag [#allocation3], %s213
        %s215 = sand.u32 %s137, 1
        %s216 = smul.addr %s215, 32
        %s217 = scalar_lea.vmem [#allocation2], %s216
        %p218 = scmp.lt.s32.totalorder %s19, 1
        %s219 = scalar_select %p218, %s19, 1
        %s220 = smul.addr %s219, 4
        %s221 = smul.addr %s220, 8
        %s222 = scalar_lea.vmem %s0, %s221
        %v223 = vld [vmem:[%s222] sm:$0xff]
        %v224 = vld [vmem:[%s222 + $0x8] sm:$0xff]
        %v225 = vld [vmem:[%s222 + $0x10] sm:$0xff]
        %v226 = vld [vmem:[%s222 + $0x18] sm:$0xff]
        %v227 = vld [vmem:[%s1] sm:$0xff]
        %v228 = vld [vmem:[%s1 + $0x8] sm:$0xff]
        %v229 = vld [vmem:[%s1 + $0x10] sm:$0xff]
        %v230 = vld [vmem:[%s2] sm:$0xff]
        %v231 = vld [vmem:[%s2 + $0x8] sm:$0xff]
        %v232 = vld [vmem:[%s2 + $0x10] sm:$0xff]
        %234 = vset.pattern.permute.xlu0 0
        %235 = vperm.xlu0 %234, %v230
        %v236 = vpop.permute.xlu0 %235
        %239 = vset.pattern.permute.xlu0 0
        %240 = vperm.xlu0 %239, %v231
        %v241 = vpop.permute.xlu0 %240
        %244 = vset.pattern.permute.xlu0 0
        %245 = vperm.xlu0 %244, %v232
        %v246 = vpop.permute.xlu0 %245
        %vm248 = vcmask 130048
        %v250 = vsel %vm248, %v227, 0
        %v253 = vsel %vm248, %v228, 0
        %v256 = vsel %vm248, %v229, 0
        %258 = vmatpush.msra.mxu0 0.0
        %259 = vmatpush.msra.mxu0 0.0
        %260 = vmatpush.msra.mxu0 0.0
        %261 = vmatpush.msra.mxu0 0.0
        %262 = vmatpush.msra.mxu0 0.0
        %263 = vmatpush.msra.mxu0 0.0
        %264 = vmatpush.msra.mxu0 0.0
        %265 = vmatpush.msra.mxu0 0.0
        %266 = vmatpush.msra.mxu0 0.0
        %267 = vmatpush.msra.mxu0 0.0
        %268 = vmatpush.msra.mxu0 0.0
        %269 = vmatpush.msra.mxu0 0.0
        %270 = vmatpush.msra.mxu0 0.0
        %271 = vmatpush.msra.mxu0 0.0
        %272 = vmatpush.msra.mxu0 %v225
        %273 = vmatpush.msra.mxu0 %v223
        %274 = vmatmul.f32.gmra.mxu0 %v250
        %v275 = vpop.f32.mrf.mxu0
        %v276 = vadd.f32 %v236, %v275
        %277 = vmatmul.f32.gmra.mxu0 %v253
        %v278 = vpop.f32.mrf.mxu0
        %v279 = vadd.f32 %v241, %v278
        %280 = vmatmul.f32.gmra.mxu0 %v256
        %v281 = vpop.f32.mrf.mxu0
        %v282 = vadd.f32 %v246, %v281
        %283 = vdwg.mxu0
        %284 = vmatpush.msra.mxu0 0.0
        %285 = vmatpush.msra.mxu0 0.0
        %286 = vmatpush.msra.mxu0 0.0
        %287 = vmatpush.msra.mxu0 0.0
        %288 = vmatpush.msra.mxu0 0.0
        %289 = vmatpush.msra.mxu0 0.0
        %290 = vmatpush.msra.mxu0 0.0
        %291 = vmatpush.msra.mxu0 0.0
        %292 = vmatpush.msra.mxu0 0.0
        %293 = vmatpush.msra.mxu0 0.0
        %294 = vmatpush.msra.mxu0 0.0
        %295 = vmatpush.msra.mxu0 0.0
        %296 = vmatpush.msra.mxu0 0.0
        %297 = vmatpush.msra.mxu0 0.0
        %298 = vmatpush.msra.mxu0 %v226
        %299 = vmatpush.msra.mxu0 %v224
        %300 = vmatmul.f32.gmra.mxu0 %v250
        %v301 = vpop.f32.mrf.mxu0
        %v302 = vadd.f32 %v236, %v301
        %303 = vmatmul.f32.gmra.mxu0 %v253
        %v304 = vpop.f32.mrf.mxu0
        %v305 = vadd.f32 %v241, %v304
        %306 = vmatmul.f32.gmra.mxu0 %v256
        %v307 = vpop.f32.mrf.mxu0
        %v308 = vadd.f32 %v246, %v307
        %309 = vdwg.mxu0
        %v310 = vmax.f32 %v279, %v305
        %311 = vmax.xlane.f32.xlu0 %v310
        %v312 = vpop.xlane.xlu0 %311
        %v313 = vsub.f32 %v279, %v312
        %v314 = vsub.f32 %v305, %v312
        %v315 = vmul.f32 %v313, 1.442695
        %v316 = vpow.pop %v315
        %v317 = vmul.f32 %v314, 1.442695
        %v318 = vpow.pop %v317
        %v319 = vadd.f32 %v316, %v318
        %320 = vadd.xlane.f32.xlu0 %v319
        %v321 = vpop.xlane.xlu0 %320
        %v322 = vrcp.pop %v321
        %v323 = vmul.f32 %v321, %v322
        %v324 = vsub.f32 1.0, %v323
        %v325 = vmul.f32 %v322, %v324
        %v326 = vadd.f32 %v322, %v325
        %vm327 = vweird.f32 %v321
        %vm328 = vweird.f32 %v322
        %vm329 = vmor %vm327, %vm328
        %v330 = vsel %vm329, %v322, %v326
        %v331 = vand.u32 2147483647, %v321
        %vm332 = vcmp.eq.f32.partialorder %v331, 8.507059e+37
        %v333 = vand.u32 %v321, 2147483648
        %v334 = vor.u32 1.1754944e-38, %v333
        %v335 = vsel %vm332, %v334, %v330
        %v336 = vmul.f32 %v316, %v335
        %v337 = vmul.f32 %v318, %v335
        %v338 = vmax.f32 %v282, %v308
        %339 = vmax.xlane.f32.xlu0 %v338
        %v340 = vpop.xlane.xlu0 %339
        %v341 = vsub.f32 %v282, %v340
        %v342 = vsub.f32 %v308, %v340
        %v343 = vmul.f32 %v341, 1.442695
        %v344 = vpow.pop %v343
        %v345 = vmul.f32 %v342, 1.442695
        %v346 = vpow.pop %v345
        %v347 = vadd.f32 %v344, %v346
        %348 = vadd.xlane.f32.xlu0 %v347
        %v349 = vpop.xlane.xlu0 %348
        %v350 = vrcp.pop %v349
        %v351 = vmul.f32 %v349, %v350
        %v352 = vsub.f32 1.0, %v351
        %v353 = vmul.f32 %v350, %v352
        %v354 = vadd.f32 %v350, %v353
        %vm355 = vweird.f32 %v349
        %vm356 = vweird.f32 %v350
        %vm357 = vmor %vm355, %vm356
        %v358 = vsel %vm357, %v350, %v354
        %v359 = vand.u32 2147483647, %v349
        %vm360 = vcmp.eq.f32.partialorder %v359, 8.507059e+37
        %v361 = vand.u32 %v349, 2147483648
        %v362 = vor.u32 1.1754944e-38, %v361
        %v363 = vsel %vm360, %v362, %v358
        %v364 = vmul.f32 %v344, %v363
        %v365 = vmul.f32 %v346, %v363
        %366 = vmatpush.xpose.msra.mxu0 0.0
        %367 = vmatpush.xpose.msra.mxu0 0.0
        %368 = vmatpush.xpose.msra.mxu0 0.0
        %369 = vmatpush.xpose.msra.mxu0 0.0
        %370 = vmatpush.xpose.msra.mxu0 0.0
        %371 = vmatpush.xpose.msra.mxu0 0.0
        %372 = vmatpush.xpose.msra.mxu0 0.0
        %373 = vmatpush.xpose.msra.mxu0 0.0
        %374 = vmatpush.xpose.msra.mxu0 0.0
        %375 = vmatpush.xpose.msra.mxu0 0.0
        %376 = vmatpush.xpose.msra.mxu0 0.0
        %377 = vmatpush.xpose.msra.mxu0 0.0
        %378 = vmatpush.xpose.msra.mxu0 0.0
        %379 = vmatpush.xpose.msra.mxu0 0.0
        %380 = vmatpush.xpose.msra.mxu0 0.0
        %381 = vmatpush.xpose.msra.mxu0 %v276
        %382 = vmatmul.f32.gmra.mxu0 %v336
        %v383 = vpop.f32.mrf.mxu0
        %v384 = vadd.f32 0.0, %v383
        %385 = vdwg.mxu0
        %386 = vmatpush.xpose.msra.mxu0 0.0
        %387 = vmatpush.xpose.msra.mxu0 0.0
        %388 = vmatpush.xpose.msra.mxu0 0.0
        %389 = vmatpush.xpose.msra.mxu0 0.0
        %390 = vmatpush.xpose.msra.mxu0 0.0
        %391 = vmatpush.xpose.msra.mxu0 0.0
        %392 = vmatpush.xpose.msra.mxu0 0.0
        %393 = vmatpush.xpose.msra.mxu0 0.0
        %394 = vmatpush.xpose.msra.mxu0 0.0
        %395 = vmatpush.xpose.msra.mxu0 0.0
        %396 = vmatpush.xpose.msra.mxu0 0.0
        %397 = vmatpush.xpose.msra.mxu0 0.0
        %398 = vmatpush.xpose.msra.mxu0 0.0
        %399 = vmatpush.xpose.msra.mxu0 0.0
        %400 = vmatpush.xpose.msra.mxu0 0.0
        %401 = vmatpush.xpose.msra.mxu0 %v302
        %402 = vmatmul.f32.gmra.mxu0 %v337
        %v403 = vpop.f32.mrf.mxu0
        %v404 = vadd.f32 %v384, %v403
        %405 = vdwg.mxu0
        %vm406 = vcmask 64512
        %v408 = vsel %vm406, %v404, 0
        %410 = vmatpush.msra.mxu0 0.0
        %411 = vmatpush.msra.mxu0 0.0
        %412 = vmatpush.msra.mxu0 0.0
        %413 = vmatpush.msra.mxu0 0.0
        %414 = vmatpush.msra.mxu0 0.0
        %415 = vmatpush.msra.mxu0 0.0
        %416 = vmatpush.msra.mxu0 0.0
        %417 = vmatpush.msra.mxu0 0.0
        %418 = vmatpush.msra.mxu0 0.0
        %419 = vmatpush.msra.mxu0 0.0
        %420 = vmatpush.msra.mxu0 0.0
        %421 = vmatpush.msra.mxu0 0.0
        %422 = vmatpush.msra.mxu0 0.0
        %423 = vmatpush.msra.mxu0 0.0
        %424 = vmatpush.msra.mxu0 0.0
        %425 = vmatpush.msra.mxu0 %v364
        %426 = vmatmul.f32.gmra.mxu0 %v408
        %v427 = vpop.f32.mrf.mxu0
        %v428 = vadd.f32 0.0, %v427
        %429 = vdwg.mxu0
        %430 = vmatpush.msra.mxu0 0.0
        %431 = vmatpush.msra.mxu0 0.0
        %432 = vmatpush.msra.mxu0 0.0
        %433 = vmatpush.msra.mxu0 0.0
        %434 = vmatpush.msra.mxu0 0.0
        %435 = vmatpush.msra.mxu0 0.0
        %436 = vmatpush.msra.mxu0 0.0
        %437 = vmatpush.msra.mxu0 0.0
        %438 = vmatpush.msra.mxu0 0.0
        %439 = vmatpush.msra.mxu0 0.0
        %440 = vmatpush.msra.mxu0 0.0
        %441 = vmatpush.msra.mxu0 0.0
        %442 = vmatpush.msra.mxu0 0.0
        %443 = vmatpush.msra.mxu0 0.0
        %444 = vmatpush.msra.mxu0 0.0
        %445 = vmatpush.msra.mxu0 %v365
        %446 = vmatmul.f32.gmra.mxu0 %v408
        %v447 = vpop.f32.mrf.mxu0
        %v448 = vadd.f32 0.0, %v447
        %449 = vdwg.mxu0
        %v450 = vld [vmem:[%s3] sm:$0xff]
        %v451 = vld [vmem:[%s3 + $0x8] sm:$0xff]
        %v452 = vld [vmem:[%s4] sm:$0xff]
        %v453 = vld [vmem:[%s4 + $0x8] sm:$0xff]
        %455 = vset.pattern.permute.xlu0 0
        %456 = vperm.xlu0 %455, %v452
        %v457 = vpop.permute.xlu0 %456
        %460 = vset.pattern.permute.xlu0 0
        %461 = vperm.xlu0 %460, %v453
        %v462 = vpop.permute.xlu0 %461
        %v465 = vsel %vm406, %v450, 0
        %v468 = vsel %vm406, %v451, 0
        %470 = vmatpush.msra.mxu0 0.0
        %471 = vmatpush.msra.mxu0 0.0
        %472 = vmatpush.msra.mxu0 0.0
        %473 = vmatpush.msra.mxu0 0.0
        %474 = vmatpush.msra.mxu0 0.0
        %475 = vmatpush.msra.mxu0 0.0
        %476 = vmatpush.msra.mxu0 0.0
        %477 = vmatpush.msra.mxu0 0.0
        %478 = vmatpush.msra.mxu0 0.0
        %479 = vmatpush.msra.mxu0 0.0
        %480 = vmatpush.msra.mxu0 0.0
        %481 = vmatpush.msra.mxu0 0.0
        %482 = vmatpush.msra.mxu0 0.0
        %483 = vmatpush.msra.mxu0 0.0
        %484 = vmatpush.msra.mxu0 0.0
        %485 = vmatpush.msra.mxu0 %v428
        %486 = vmatmul.f32.gmra.mxu0 %v465
        %v487 = vpop.f32.mrf.mxu0
        %v488 = vadd.f32 %v457, %v487
        %489 = vmatmul.f32.gmra.mxu0 %v468
        %v490 = vpop.f32.mrf.mxu0
        %v491 = vadd.f32 %v462, %v490
        %492 = vdwg.mxu0
        %493 = vmatpush.msra.mxu0 0.0
        %494 = vmatpush.msra.mxu0 0.0
        %495 = vmatpush.msra.mxu0 0.0
        %496 = vmatpush.msra.mxu0 0.0
        %497 = vmatpush.msra.mxu0 0.0
        %498 = vmatpush.msra.mxu0 0.0
        %499 = vmatpush.msra.mxu0 0.0
        %500 = vmatpush.msra.mxu0 0.0
        %501 = vmatpush.msra.mxu0 0.0
        %502 = vmatpush.msra.mxu0 0.0
        %503 = vmatpush.msra.mxu0 0.0
        %504 = vmatpush.msra.mxu0 0.0
        %505 = vmatpush.msra.mxu0 0.0
        %506 = vmatpush.msra.mxu0 0.0
        %507 = vmatpush.msra.mxu0 0.0
        %508 = vmatpush.msra.mxu0 %v448
        %509 = vmatmul.f32.gmra.mxu0 %v465
        %v510 = vpop.f32.mrf.mxu0
        %v511 = vadd.f32 %v457, %v510
        %512 = vmatmul.f32.gmra.mxu0 %v468
        %v513 = vpop.f32.mrf.mxu0
        %v514 = vadd.f32 %v462, %v513
        %515 = vdwg.mxu0
        %v516 = vadd.f32 %v223, %v488
        %v517 = vadd.f32 %v224, %v511
        %v518 = vadd.f32 %v225, %v491
        %v519 = vadd.f32 %v226, %v514
        %520 = vst [vmem:[%s217] sm:$0xff] %v516
        %521 = vst [vmem:[%s217 + $0x8] sm:$0xff] %v517
        %522 = vst [vmem:[%s217 + $0x10] sm:$0xff] %v518
        %523 = vst [vmem:[%s217 + $0x18] sm:$0xff] %v519
        %s524 = sand.u32 %s137, 1
        %s525 = scalar_lea.sflag [#allocation3], %s524
        %s526 = sand.u32 %s137, 1
        %s527 = smul.addr %s526, 32
        %s528 = scalar_lea.vmem [#allocation2], %s527
        // Predicated region
        $region41: #{tpu_custom_call.1} parent=39 // pred_check
          %p529 = pneg %p147
        $region42: #{tpu_custom_call.1} parent=39 // pred_check_branch
          %531 = sbr.rel (%p529) target = $region44
        $region43: #{tpu_custom_call.1} parent=39 // pred_region
          %533 = vsyncadd %s525, 0
          %s534 = smul.addr %s19, 4
          %s535 = smul.addr %s534, 8
          %s536 = scalar_lea.hbm %s5, %s535
          %s537 = sshll.u32 %s528, 4
          %s538 = int_to_ptr.vmem [resolvable:$true] %s537
          %s539 = sshll.u32 %s536, 4
          %s540 = int_to_ptr.hbm [resolvable:$true] %s539
          %545 = dma.vmem_to_hbm [thread:$0]  %s538, 512, %s540, %s525, 256, 256, 16
        $region44: #{tpu_custom_call.1} parent=39 // pred_fallthru
          _
      $region40: #{tpu_custom_call.1} parent=5 // pred_fallthru
        _
      %p546 = scmp.le.s32.totalorder 2, %s14
      // Predicated region
      $region45: #{tpu_custom_call.1} parent=5 // pred_check
        %p547 = pneg %p546
      $region46: #{tpu_custom_call.1} parent=5 // pred_check_branch
        %549 = sbr.rel (%p547) target = $region48
      $region47: #{tpu_custom_call.1} parent=5 // pred_region
        %s550 = ssub.s32 %s14, 2
        // Predicated region
        $region49: #{tpu_custom_call.1} parent=47 // pred_check
          %p551 = pneg %p153
        $region50: #{tpu_custom_call.1} parent=47 // pred_check_branch
          %553 = sbr.rel (%p551) target = $region52
        $region51: #{tpu_custom_call.1} parent=47 // pred_region
          %s554 = sand.u32 %s138, 1
          %s555 = scalar_lea.sflag [#allocation3], %s554
          %s556 = sand.u32 %s138, 1
          %s557 = smul.addr %s556, 32
          %s558 = scalar_lea.vmem [#allocation2], %s557
          %560 = dma.done %s555, 512
        $region52: #{tpu_custom_call.1} parent=47 // pred_fallthru
          _
      $region48: #{tpu_custom_call.1} parent=5 // pred_fallthru
        _
    $region6: #{tpu_custom_call.1} parent=1 // loop_footer
      %s18 = sadd.s32 1, %s14
    $region7: #{tpu_custom_call.1} parent=1 // loop_footer_branch
      %13 = sbr.rel target = $region3
    $region8: #{tpu_custom_call.1} parent=1 // loop_exit
      _
    %561 = vsyncpa [#allocation3], 1
    %s562 = scalar_lea.sflag [#allocation3], 1
    %563 = vsyncpa %s562, 1

</llo_original>
